<compile_context>
chip_gen: v5e
topology: v5e:2x2
jax: 0.10.0
libtpu: 0.0.40
codegen_flags: <defaults>
</compile_context>

<pallas_src>
import jax
import jax.numpy as jnp
from jax.experimental import pallas as pl
from jax.experimental.pallas import tpu as pltpu

EPS = 1e-6  # matches F.pairwise_distance default eps


def _vmem_capacity_bytes():
    """Physical VMEM per TensorCore; conservative fallback if query unavailable."""
    try:
        cap = getattr(pltpu.get_tpu_info(), "vmem_capacity_bytes", None)
        if cap:
            return int(cap)
    except Exception:
        pass
    return 64 * 1024 * 1024  # v7x per-TC VMEM (safe lower bound for all gens)


def _plan(batch, feat, itemsize, vmem_limit_bytes):
    """Pick (tile_rows, core_splits, tiles_per_split)."""
    lanes = ((feat + 127) // 128) * 128  # VMEM blocks are lane-padded to 128
    # Per-batch-row VMEM bytes:
    #   double-buffered: 2 native-dtype input tiles + lane-padded (row,1) f32 label
    #   single:          ~3 f32 intermediates (upcasts / diff / diff^2)
    per_row_vmem = 2 * (2 * lanes * itemsize + 128 * 4) + 3 * lanes * 4
    budget = vmem_limit_bytes * 3 // 4  # headroom for accumulator / compiler scratch
    tb_vmem = max(8, budget // per_row_vmem)

    # HBM byte target: >= ~2 MiB of real data per input per grid step so the
    # fixed ~0.35 us/step overhead is amortized (>=85% of HBM roofline).
    target_bytes = 2 * 1024 * 1024
    tb_hbm = max(8, -(-target_bytes // (feat * itemsize)))

    b_ceil8 = ((batch + 7) // 8) * 8
    tb0 = max(8, (min(tb_vmem, tb_hbm, 32768, b_ceil8) // 8) * 8)

    num_tiles = -(-batch // tb0)
    nc = 2 if num_tiles >= 2 else 1        # leading "parallel" axis -> 2 TCs on v7x
    tpc = -(-num_tiles // nc)
    total = nc * tpc
    # Re-fit the tile to the final rectangular (nc, tpc) grid so tail padding stays
    # tiny (< 8*total rows) instead of wasting up to a whole tile of HBM traffic.
    rows = -(-batch // total)
    tb = ((rows + 7) // 8) * 8             # multiple of 8, still <= tb0 (VMEM-safe)
    return tb, nc, tpc


def _make_kernel(true_b, tb, tpc, margin, eps, need_mask):
    def kernel(x1_ref, x2_ref, label_ref, out_ref):
        c = pl.program_id(0)  # core split ("parallel")
        i = pl.program_id(1)  # batch-tile reduction ("arbitrary")

        # Zero this core's resident accumulator block on its first step.
        @pl.when(i == 0)
        def _():
            out_ref[...] = jnp.zeros_like(out_ref)

        # Native-dtype tiles, upcast to f32 in-register (v5e VPU has no bf16).
        x1 = x1_ref[...].astype(jnp.float32)                 # (TB, D)
        x2 = x2_ref[...].astype(jnp.float32)                 # (TB, D)
        lab = label_ref[...]                                 # (TB, 1) f32

        diff = x1 - x2 + eps                                 # eps on the diff (PyTorch)
        d2 = jnp.sum(diff * diff, axis=-1, keepdims=True)    # (TB, 1) squared L2
        d = jnp.sqrt(d2)                                     # (TB, 1) distance
        hinge = jnp.maximum(margin - d, 0.0)
        per_row = lab * d2 + (1.0 - lab) * (hinge * hinge)   # (TB, 1)

        def accumulate(rows):
            partial = jnp.sum(rows, axis=0, keepdims=True)   # (1, 1)
            # Every element of the (8,128) block carries the same running sum;
            # the wrapper reads element [0, 0] of each core's block.
            out_ref[...] = out_ref[...] + partial

        if need_mask:
            tile_start = (c * tpc + i) * tb
            has_pad = tile_start + tb > true_b  # only tail tile(s) pay for the mask

            @pl.when(has_pad)
            def _():
                row = jax.lax.broadcasted_iota(jnp.int32, (tb, 1), 0) + tile_start
                accumulate(jnp.where(row < true_b, per_row, 0.0))

            @pl.when(jnp.logical_not(has_pad))
            def _():
                accumulate(per_row)
        else:
            accumulate(per_row)

    return kernel


def contrastive_loss(output1, output2, label, *, margin=1.0):
    B, D = output1.shape
    itemsize = jnp.dtype(output1.dtype).itemsize

    vmem_limit = min(_vmem_capacity_bytes() * 3 // 4, 100 * 1024 * 1024)
    TB, NC, TPC = _plan(B, D, itemsize, vmem_limit)
    B_pad = NC * TPC * TB          # virtual padded extent (no wrapper-side copy)

    # Clamp the row-block index so a (rare) fully-out-of-range tail tile still maps
    # to an in-bounds DMA; its rows are masked to zero in-kernel regardless.
    max_blk = -(-B // TB) - 1
    row_map = lambda c, i: (jnp.minimum(c * TPC + i, max_blk), 0)

    label2d = label.reshape(B, 1).astype(jnp.float32)
    kernel = _make_kernel(true_b=B, tb=TB, tpc=TPC, margin=float(margin),
                          eps=EPS, need_mask=(B_pad != B))

    out = pl.pallas_call(
        kernel,
        out_shape=jax.ShapeDtypeStruct((NC * 8, 128), jnp.float32),
        grid_spec=pltpu.PrefetchScalarGridSpec(
            num_scalar_prefetch=0,
            grid=(NC, TPC),
            in_specs=[
                pl.BlockSpec((TB, D), row_map),
                pl.BlockSpec((TB, D), row_map),
                pl.BlockSpec((TB, 1), row_map),
            ],
            # Per-core resident accumulator block (same block index across the
            # reduction axis); (8,128) keeps the store lane-dense and legally tiled.
            out_specs=pl.BlockSpec((8, 128), lambda c, i: (c, 0)),
        ),
        compiler_params=pltpu.CompilerParams(
            dimension_semantics=("parallel", "arbitrary"),
            vmem_limit_bytes=int(vmem_limit),
        ),
        cost_estimate=pl.CostEstimate(
            flops=int(5 * B * D + 8 * B),
            transcendentals=int(B),
            bytes_accessed=int(2 * B * D * itemsize + 4 * B + NC * 8 * 128 * 4),
        ),
    )(output1, output2, label2d)

    # All elements of each core's block hold that core's partial sum.
    partials = out[0::8, 0]                    # (NC,)
    return jnp.sum(partials) * (0.5 / B)       # 0.5 * mean over the TRUE batch


def _reference(output1, output2, label, margin=1.0):
    diff = output1.astype(jnp.float32) - output2.astype(jnp.float32) + EPS
    d = jnp.sqrt(jnp.sum(diff * diff, axis=-1))
    return 0.5 * jnp.mean(
        label * d**2 + (1.0 - label) * jnp.clip(margin - d, 0.0) ** 2
    )


if __name__ == "__main__":
    key = jax.random.PRNGKey(0)
    k1, k2, k3 = jax.random.split(key, 3)

    # Small siamese-net embedding pairs.
    B, D = 8, 32
    output1 = jax.random.normal(k1, (B, D), dtype=jnp.float32)
    output2 = jax.random.normal(k2, (B, D), dtype=jnp.float32)
    label = jax.random.bernoulli(k3, 0.5, (B,)).astype(jnp.float32)

    loss = jax.block_until_ready(contrastive_loss(output1, output2, label))
    ref = _reference(output1, output2, label)
    assert jnp.allclose(loss, ref, rtol=1e-5, atol=1e-6), (loss, ref)

    # Ragged batch (not a multiple of 8) -> boundary-block masking path.
    B2 = 11
    o1 = jax.random.normal(k1, (B2, D), dtype=jnp.float32)
    o2 = jax.random.normal(k2, (B2, D), dtype=jnp.float32)
    lab2 = jax.random.bernoulli(k3, 0.5, (B2,)).astype(jnp.float32)
    loss2 = jax.block_until_ready(contrastive_loss(o1, o2, lab2))
    ref2 = _reference(o1, o2, lab2)
    assert jnp.allclose(loss2, ref2, rtol=1e-5, atol=1e-6), (loss2, ref2)

    # Multi-tile batch -> exercises the 2-D (core_split, tiles) grid, the resident
    # per-core accumulators, and the gated tail mask.
    B3 = 20001
    o1b = jax.random.normal(k1, (B3, D), dtype=jnp.float32)
    o2b = jax.random.normal(k2, (B3, D), dtype=jnp.float32)
    lab3 = jax.random.bernoulli(k3, 0.5, (B3,)).astype(jnp.float32)
    loss3 = jax.block_until_ready(contrastive_loss(o1b, o2b, lab3))
    ref3 = _reference(o1b, o2b, lab3)
    assert jnp.allclose(loss3, ref3, rtol=1e-4, atol=1e-5), (loss3, ref3)

    print("KERNEL_OK")
</pallas_src>

<mosaic_0001>
module attributes {stable_mosaic.version = 11 : i64} {
  func.func @kernel(%arg0: i32, %arg1: i32, %arg2: memref<8x32xf32, #tpu.memory_space<vmem>>, %arg3: memref<8x32xf32, #tpu.memory_space<vmem>>, %arg4: memref<8x1xf32, #tpu.memory_space<vmem>>, %arg5: memref<8x128xf32, #tpu.memory_space<vmem>>) attributes {dimension_semantics = [#tpu.dimension_semantics<parallel>, #tpu.dimension_semantics<arbitrary>], iteration_bounds = array<i64: 1, 1>, scalar_prefetch = 0 : i64, scratch_operands = 0 : i64, tpu.core_type = #tpu.core_type<tc>, window_params = [{transform_indices = @transform_0, window_bounds = array<i64: 8, 32>}, {transform_indices = @transform_1, window_bounds = array<i64: 8, 32>}, {transform_indices = @transform_2, window_bounds = array<i64: 8, 1>}, {transform_indices = @transform_3, window_bounds = array<i64: 8, 128>}]} {
    %c0_i32 = arith.constant 0 : i32
    %0 = arith.cmpi eq, %arg1, %c0_i32 : i32
    %1 = arith.extui %0 : i1 to i32
    %c0_i32_0 = arith.constant 0 : i32
    %2 = arith.cmpi ne, %1, %c0_i32_0 : i32
    scf.if %2 {
      %cst_15 = arith.constant 0.000000e+00 : f32
      %29 = vector.broadcast %cst_15 : f32 to vector<8x128xf32>
      %c0_16 = arith.constant 0 : index
      %c0_17 = arith.constant 0 : index
      %30 = vector.load %arg5[%c0_16, %c0_17] : memref<8x128xf32, #tpu.memory_space<vmem>>, vector<8x128xf32>
      tpu.vector_store %arg5[%c0_16, %c0_17], %29 {strides = array<i32>} : memref<8x128xf32, #tpu.memory_space<vmem>>, vector<8x128xf32>,
    } else {
    }
    %c0 = arith.constant 0 : index
    %c0_1 = arith.constant 0 : index
    %3 = vector.load %arg2[%c0, %c0_1] : memref<8x32xf32, #tpu.memory_space<vmem>>, vector<8x32xf32>
    %c0_2 = arith.constant 0 : index
    %c0_3 = arith.constant 0 : index
    %4 = vector.load %arg3[%c0_2, %c0_3] : memref<8x32xf32, #tpu.memory_space<vmem>>, vector<8x32xf32>
    %c0_4 = arith.constant 0 : index
    %c0_5 = arith.constant 0 : index
    %5 = vector.load %arg4[%c0_4, %c0_5] : memref<8x1xf32, #tpu.memory_space<vmem>>, vector<8x1xf32>
    %6 = arith.subf %3, %4 : vector<8x32xf32>
    %cst = arith.constant 9.99999997E-7 : f32
    %7 = vector.broadcast %cst : f32 to vector<8x32xf32>
    %8 = arith.addf %6, %7 : vector<8x32xf32>
    %9 = arith.mulf %8, %8 : vector<8x32xf32>
    %cst_6 = arith.constant dense<0.000000e+00> : vector<8xf32>
    %10 = vector.multi_reduction <add>, %9, %cst_6 [1] : vector<8x32xf32> to vector<8xf32>
    %11 = vector.shape_cast %10 : vector<8xf32> to vector<8x1xf32>
    %12 = math.sqrt %11 : vector<8x1xf32>
    %cst_7 = arith.constant 1.000000e+00 : f32
    %13 = vector.broadcast %cst_7 : f32 to vector<8x1xf32>
    %14 = arith.subf %13, %12 : vector<8x1xf32>
    %cst_8 = arith.constant 0.000000e+00 : f32
    %15 = vector.broadcast %cst_8 : f32 to vector<8x1xf32>
    %16 = arith.maximumf %14, %15 : vector<8x1xf32>
    %17 = arith.mulf %5, %11 : vector<8x1xf32>
    %cst_9 = arith.constant 1.000000e+00 : f32
    %18 = vector.broadcast %cst_9 : f32 to vector<8x1xf32>
    %19 = arith.subf %18, %5 : vector<8x1xf32>
    %20 = arith.mulf %16, %16 : vector<8x1xf32>
    %21 = arith.mulf %19, %20 : vector<8x1xf32>
    %22 = arith.addf %17, %21 : vector<8x1xf32>
    %cst_10 = arith.constant dense<0.000000e+00> : vector<1xf32>
    %23 = vector.multi_reduction <add>, %22, %cst_10 [0] : vector<8x1xf32> to vector<1xf32>
    %24 = vector.shape_cast %23 : vector<1xf32> to vector<1x1xf32>
    %c0_11 = arith.constant 0 : index
    %c0_12 = arith.constant 0 : index
    %25 = vector.load %arg5[%c0_11, %c0_12] : memref<8x128xf32, #tpu.memory_space<vmem>>, vector<8x128xf32>
    %26 = vector.broadcast %24 : vector<1x1xf32> to vector<8x128xf32>
    %27 = arith.addf %25, %26 : vector<8x128xf32>
    %c0_13 = arith.constant 0 : index
    %c0_14 = arith.constant 0 : index
    %28 = vector.load %arg5[%c0_13, %c0_14] : memref<8x128xf32, #tpu.memory_space<vmem>>, vector<8x128xf32>
    tpu.vector_store %arg5[%c0_13, %c0_14], %27 {strides = array<i32>} : memref<8x128xf32, #tpu.memory_space<vmem>>, vector<8x128xf32>,
    return
  }
  func.func @transform_0(%arg0: i32, %arg1: i32) -> (i32, i32) {
    %c1_i32 = arith.constant 1 : i32
    %0 = arith.muli %arg0, %c1_i32 : i32
    %1 = arith.addi %0, %arg1 : i32
    %c0_i32 = arith.constant 0 : i32
    %2 = arith.minsi %1, %c0_i32 : i32
    %c0_i32_0 = arith.constant 0 : i32
    %c0_i32_1 = arith.constant 0 : i32
    return %2, %c0_i32_0 : i32, i32
  }
  func.func @transform_1(%arg0: i32, %arg1: i32) -> (i32, i32) {
    %c1_i32 = arith.constant 1 : i32
    %0 = arith.muli %arg0, %c1_i32 : i32
    %1 = arith.addi %0, %arg1 : i32
    %c0_i32 = arith.constant 0 : i32
    %2 = arith.minsi %1, %c0_i32 : i32
    %c0_i32_0 = arith.constant 0 : i32
    %c0_i32_1 = arith.constant 0 : i32
    return %2, %c0_i32_0 : i32, i32
  }
  func.func @transform_2(%arg0: i32, %arg1: i32) -> (i32, i32) {
    %c1_i32 = arith.constant 1 : i32
    %0 = arith.muli %arg0, %c1_i32 : i32
    %1 = arith.addi %0, %arg1 : i32
    %c0_i32 = arith.constant 0 : i32
    %2 = arith.minsi %1, %c0_i32 : i32
    %c0_i32_0 = arith.constant 0 : i32
    %c0_i32_1 = arith.constant 0 : i32
    return %2, %c0_i32_0 : i32, i32
  }
  func.func @transform_3(%arg0: i32, %arg1: i32) -> (i32, i32) {
    %c0_i32 = arith.constant 0 : i32
    %c0_i32_0 = arith.constant 0 : i32
    return %arg0, %c0_i32 : i32, i32
  }
}

</mosaic_0001>

<llo_original>
// kernel: tpu_custom_call.1
$region0: #{tpu_custom_call.1}
  #allocation0 [shape = 'u32[]', space=smem, size = 0x4, offset = 0x4, fixed_abs, tag = 'smem constant byte address 0x4 - core index']
  #allocation1 [shape = 'u32[72,128]{1,0:T(1,128)}', space=vmem, size = 0x9000, scoped, tag = 'internal scratch']
  %s0 = inlined_call_operand.vmem [shape: f32[8,32], index: 0, kind: input, shape index: {}]
  %s1 = inlined_call_operand.hbm [shape: f32[8,32], index: 1, kind: input, shape index: {}]
  %s2 = inlined_call_operand.vmem [shape: f32[8,1], index: 2, kind: input, shape index: {}]
  %s3 = inlined_call_operand.hbm [shape: f32[8,128], index: 3, kind: output, shape index: {}]
  %s4 = sld [smem:[#allocation0]]
  $region30: #{tpu_custom_call.1} parent=0
    _
  %s6 = ssub.s32 1, %s4
  %s7 = scalar_select 0, %s6, %s4
  $region1: #{tpu_custom_call.1} parent=0
    #allocation2 [shape = 'u8[4096]{0}', space=vmem, size = 0x1000, scoped, tag = 'input window, operand 1, single buffered']
    #allocation3 [shape = 's32[1]{0}', space=sflag, size = 0x4, scoped, tag = 'scoped memory for tpu_custom_call.1']
    #allocation4 [shape = 's32[1]{0}', space=sflag, size = 0x4, scoped, tag = 'scoped memory for tpu_custom_call.1']
    #allocation5 [shape = 'u8[4096]{0}', space=vmem, size = 0x1000, scoped, tag = 'output window, operand 0, single buffered']
    %8 = vsyncpa [#allocation3], 0
    %9 = vsyncpa [#allocation4], 0
    // Predicated region
    $region2: #{tpu_custom_call.1} parent=1 // pred_check
      _
    $region3: #{tpu_custom_call.1} parent=1 // pred_check_branch
      %11 = sbr.rel (0) target = $region5
    $region4: #{tpu_custom_call.1} parent=1 // pred_region
      %s12 = sadd.s32 0, 0
      %p13 = scmp.lt.s32.totalorder %s12, 0
      %s14 = scalar_select %p13, %s12, 0
      %p15 = scmp.lt.s32.totalorder %s14, 0
      %s16 = scalar_select %p15, %s14, 0
      %s17 = smul.addr %s16, 8
      %s18 = scalar_lea.vmem %s0, %s17
      %s19 = sadd.s32 0, 0
      %p20 = scmp.lt.s32.totalorder %s19, 0
      %s21 = scalar_select %p20, %s19, 0
    $region5: #{tpu_custom_call.1} parent=1 // pred_fallthru
      _
    // Predicated region
    $region6: #{tpu_custom_call.1} parent=1 // pred_check
      _
    $region7: #{tpu_custom_call.1} parent=1 // pred_check_branch
      %23 = sbr.rel (0) target = $region9
    $region8: #{tpu_custom_call.1} parent=1 // pred_region
      %s24 = sadd.s32 0, 0
      %p25 = scmp.lt.s32.totalorder %s24, 0
      %s26 = scalar_select %p25, %s24, 0
      %28 = vsyncadd [#allocation3], 0
      %s29 = smul.addr %s26, 8
      %s30 = scalar_lea.hbm %s1, %s29
      %s32 = sshll.u32 %s30, 4
      %s33 = int_to_ptr.hbm [resolvable:$true] %s32
      %s34 = sshll.u32 [#allocation2], 4
      %s35 = int_to_ptr.vmem [resolvable:$true] %s34
      %37 = dma.hbm_to_vmem [thread:$0]  %s33, 128, %s35, [#allocation3]
    $region9: #{tpu_custom_call.1} parent=1 // pred_fallthru
      _
    // Predicated region
    $region10: #{tpu_custom_call.1} parent=1 // pred_check
      _
    $region11: #{tpu_custom_call.1} parent=1 // pred_check_branch
      %39 = sbr.rel (0) target = $region13
    $region12: #{tpu_custom_call.1} parent=1 // pred_region
      %s40 = sadd.s32 0, 0
      %p41 = scmp.lt.s32.totalorder %s40, 0
      %s42 = scalar_select %p41, %s40, 0
      %p43 = scmp.lt.s32.totalorder %s42, 0
      %s44 = scalar_select %p43, %s42, 0
      %s45 = smul.addr %s44, 8
      %s46 = scalar_lea.vmem %s2, %s45
      %s47 = sadd.s32 0, 0
      %p48 = scmp.lt.s32.totalorder %s47, 0
      %s49 = scalar_select %p48, %s47, 0
    $region13: #{tpu_custom_call.1} parent=1 // pred_fallthru
      _
    // Predicated region
    $region14: #{tpu_custom_call.1} parent=1 // pred_check
      _
    $region15: #{tpu_custom_call.1} parent=1 // pred_check_branch
      %51 = sbr.rel (0) target = $region17
    $region16: #{tpu_custom_call.1} parent=1 // pred_region
      %53 = dma.done [#allocation3], 128
    $region17: #{tpu_custom_call.1} parent=1 // pred_fallthru
      _
    %s54 = sadd.s32 0, 0
    %p55 = scmp.lt.s32.totalorder %s54, 0
    %s56 = scalar_select %p55, %s54, 0
    %p57 = scmp.lt.s32.totalorder %s56, 0
    %s58 = scalar_select %p57, %s56, 0
    %s59 = smul.addr %s58, 8
    %s60 = scalar_lea.vmem %s0, %s59
    %s61 = sadd.s32 0, 0
    %p62 = scmp.lt.s32.totalorder %s61, 0
    %s63 = scalar_select %p62, %s61, 0
    %p64 = scmp.lt.s32.totalorder %s63, 0
    %s65 = scalar_select %p64, %s63, 0
    %s66 = smul.addr %s65, 8
    %s67 = scalar_lea.vmem %s2, %s66
    %s68 = sadd.s32 0, 0
    %p69 = scmp.lt.s32.totalorder %s68, 0
    %s70 = scalar_select %p69, %s68, 0
    %p71 = scmp.lt.s32.totalorder %s70, 0
    %s72 = scalar_select %p71, %s70, 0
    %s73 = smul.addr %s72, 8
    %s74 = scalar_lea.vmem %s0, %s73
    %s75 = sadd.s32 0, 0
    %p76 = scmp.lt.s32.totalorder %s75, 0
    %s77 = scalar_select %p76, %s75, 0
    %s78 = sadd.s32 0, 0
    %p79 = scmp.lt.s32.totalorder %s78, 0
    %s80 = scalar_select %p79, %s78, 0
    %s81 = sadd.s32 0, 0
    %p82 = scmp.lt.s32.totalorder %s81, 0
    %s83 = scalar_select %p82, %s81, 0
    %p84 = scmp.lt.s32.totalorder %s83, 0
    %s85 = scalar_select %p84, %s83, 0
    %s86 = smul.addr %s85, 8
    %s87 = scalar_lea.vmem %s2, %s86
    %s88 = sadd.s32 0, 0
    %p89 = scmp.lt.s32.totalorder %s88, 0
    %s90 = scalar_select %p89, %s88, 0
    %p91 = scmp.eq.s32.totalorder 0, 0
    // Predicated region
    $region18: #{tpu_custom_call.1} parent=1 // pred_check
      %p92 = pneg %p91
    $region19: #{tpu_custom_call.1} parent=1 // pred_check_branch
      %94 = sbr.rel (%p92) target = $region21
    $region20: #{tpu_custom_call.1} parent=1 // pred_region
      %95 = vst [vmem:[#allocation5] sm:$0xff] 0.0
    $region21: #{tpu_custom_call.1} parent=1 // pred_fallthru
      _
    %v96 = vld [vmem:[%s74] sm:$0xff]
    %v97 = vld [vmem:[#allocation2] sm:$0xff]
    %v98 = vld [vmem:[%s87] sm:$0xff]
    %v99 = vsub.f32 %v96, %v97
    %v100 = vadd.f32 %v99, 1e-06
    %v101 = vmul.f32 %v100, %v100
    %vm102 = vcmask 261120
    %v103 = vsel %vm102, %v101, 0.0
    %104 = vadd.xlane.f32.xlu0 %v103
    %v105 = vpop.xlane.xlu0 %104
    %v106 = vrsqrt.pop %v105
    %v107 = vmul.f32 %v106, %v105
    %v108 = vmul.f32 %v107, %v106
    %v109 = vmul.f32 0.5, %v108
    %v110 = vsub.f32 1.5, %v109
    %v111 = vmul.f32 %v106, %v110
    %v112 = vmul.f32 %v105, %v111
    %vm113 = vcmp.eq.f32.partialorder %v105, inf
    %v114 = vsel %vm113, %v105, %v112
    %vm115 = vcmp.eq.f32.partialorder %v105, 0.0
    %v116 = vand.u32 %v105, 2147483648
    %v117 = vsel %vm115, %v116, %v114
    %v118 = vsub.f32 1.0, %v117
    %v119 = vmax.f32 %v118, 0.0
    %v120 = vmul.f32 %v98, %v105
    %v121 = vsub.f32 1.0, %v98
    %v122 = vmul.f32 %v119, %v119
    %v123 = vmul.f32 %v121, %v122
    %v124 = vadd.f32 %v120, %v123
    %vm125 = vcmask 7168
    %v126 = vsel %vm125, %v124, 0.0
    %v127 = vrot.slane %v126, 4
    %v128 = vadd.f32 %v126, %v127
    %v129 = vrot.slane %v128, 2
    %v130 = vadd.f32 %v128, %v129
    %v131 = vrot.slane %v130, 1
    %v132 = vadd.f32 %v130, %v131
    %v133 = vld [vmem:[#allocation5] sm:$0xff]
    %135 = vset.pattern.permute.xlu0 0
    %136 = vperm.xlu0 %135, %v132
    %v137 = vpop.permute.xlu0 %136
    %v139 = vadd.f32 %v133, %v137
    %140 = vst [vmem:[#allocation5] sm:$0xff] %v139
    // Predicated region
    $region22: #{tpu_custom_call.1} parent=1 // pred_check
      _
    $region23: #{tpu_custom_call.1} parent=1 // pred_check_branch
      %142 = sbr.rel (0) target = $region25
    $region24: #{tpu_custom_call.1} parent=1 // pred_region
      %144 = vsyncadd [#allocation4], 0
      %s146 = sshll.u32 [#allocation5], 4
      %s147 = int_to_ptr.vmem [resolvable:$true] %s146
      %s148 = sshll.u32 %s3, 4
      %s149 = int_to_ptr.hbm [resolvable:$true] %s148
      %151 = dma.vmem_to_hbm [thread:$0]  %s147, 128, %s149, [#allocation4]
    $region25: #{tpu_custom_call.1} parent=1 // pred_fallthru
      _
    // Predicated region
    $region26: #{tpu_custom_call.1} parent=1 // pred_check
      _
    $region27: #{tpu_custom_call.1} parent=1 // pred_check_branch
      %153 = sbr.rel (0) target = $region29
    $region28: #{tpu_custom_call.1} parent=1 // pred_region
      %155 = dma.done [#allocation4], 128
    $region29: #{tpu_custom_call.1} parent=1 // pred_fallthru
      _
    %156 = vsyncpa [#allocation3], 1
    %157 = vsyncpa [#allocation4], 1

</llo_original>
